<compile_context>
chip_gen: v7x
topology: tpu7x:2x2x1
jax: 0.10.0
libtpu: 0.0.40
codegen_flags: <defaults>
</compile_context>

<pallas_src>
import jax
import jax.numpy as jnp
import numpy as np
from jax.experimental import pallas as pl
from jax.experimental.pallas import tpu as pltpu

BN_EPS = 1e-5


def _make_kernel(B, L, C):
    N = B * L

    def kernel(x_ref, w12_ref, w3_ref, gamma_ref, beta_ref, b3_ref, o_ref):
        x = x_ref[...]                                            # (C, N)
        # local position within each length-L segment (lane index mod L)
        lpos = jax.lax.broadcasted_iota(jnp.int32, (1, N), 1) % L

        def shifted(z, s):
            # out[:, r] = z[:, r - s] within each length-L segment, zeros at the edges.
            if s == 0:
                return z
            zr = pltpu.roll(z, shift=s % N, axis=1)               # lane rotate (XLU)
            if s > 0:
                return jnp.where(lpos >= s, zr, 0.0)
            return jnp.where(lpos < L + s, zr, 0.0)

        def conv(inp, w_taps_ref, K):
            # y[:, l] = sum_k W_k @ inp[:, l + k - pad]  (zero-padded 1D conv)
            pad = (K - 1) // 2
            acc = shifted(
                jnp.dot(w_taps_ref[0], inp, preferred_element_type=jnp.float32), pad)
            for k in range(1, K):                                  # static unroll
                acc = acc + shifted(
                    jnp.dot(w_taps_ref[k], inp, preferred_element_type=jnp.float32),
                    pad - k)
            return acc

        # Conv1d(k=5, pad=2) with Conv1d(k=1) folded in (b1/b2 cancel under BN mean).
        y = conv(x, w12_ref, 5)

        # BatchNorm1d, training-mode biased stats over (batch, length) per channel.
        mean = jnp.mean(y, axis=1, keepdims=True)                  # (C, 1)
        var = jnp.mean(y * y, axis=1, keepdims=True) - mean * mean
        y = (y - mean) * jax.lax.rsqrt(var + BN_EPS)
        y = y * gamma_ref[...] + beta_ref[...]

        # Swish: y * sigmoid(y)   (EUP)
        y = y * jax.nn.sigmoid(y)

        # Conv1d(k=3, pad=1)
        y = conv(y, w3_ref, 3) + b3_ref[...]

        # Residual: x + 0.1 * seq(x)
        o_ref[...] = x + 0.1 * y

    return kernel


@jax.jit
def residual_block(x_ncl, w1, b1, w2, b2, gamma, beta, w3, b3):
    """x_ncl: (B, C, L) float32 (PyTorch NCL layout). Returns (B, C, L)."""
    B, C, L = x_ncl.shape
    N = B * L
    del b1, b2  # per-channel constant biases before train-mode BN cancel exactly

    # (C, B*L): channels on sublanes, positions on lanes -> lane-dense I/O.
    x_cn = jnp.transpose(x_ncl, (1, 0, 2)).reshape(C, N)

    # Fold Conv1d(k=1) into the k=5 taps: w12[k] = W2 @ W1[:, :, k]   (5, C_out, C_in)
    w12 = jnp.einsum("oi,ijk->koj", w2[:, :, 0], w1)
    # torch conv weight (C_out, C_in, K) -> (K, C_out, C_in)
    w3_t = jnp.transpose(w3, (2, 0, 1))

    col = lambda v: v.reshape(C, 1).astype(jnp.float32)

    vmem = pl.BlockSpec(memory_space=pltpu.MemorySpace.VMEM)
    out_cn = pl.pallas_call(
        _make_kernel(B, L, C),
        out_shape=jax.ShapeDtypeStruct((C, N), jnp.float32),
        in_specs=[vmem] * 6,
        out_specs=vmem,
    )(x_cn, w12, w3_t, col(gamma), col(beta), col(b3))

    return jnp.transpose(out_cn.reshape(C, B, L), (1, 0, 2))


def _reference(x_ncl, w1, b1, w2, b2, gamma, beta, w3, b3):
    """Pure-JAX reference matching the PyTorch module (training-mode BN)."""
    def conv1d(x, w, b, pad):
        y = jax.lax.conv_general_dilated(
            x, w, window_strides=(1,), padding=[(pad, pad)],
            dimension_numbers=("NCH", "OIH", "NCH"))
        return y + b[None, :, None]

    y = conv1d(x_ncl, w1, b1, 2)
    y = conv1d(y, w2, b2, 0)
    mean = y.mean(axis=(0, 2), keepdims=True)
    var = ((y - mean) ** 2).mean(axis=(0, 2), keepdims=True)
    y = (y - mean) / jnp.sqrt(var + BN_EPS)
    y = y * gamma[None, :, None] + beta[None, :, None]
    y = y * jax.nn.sigmoid(y)
    y = conv1d(y, w3, b3, 1)
    return x_ncl + 0.1 * y


if __name__ == "__main__":
    B, C, L = 2, 16, 64  # batch, dim (channels), sequence length

    key = jax.random.PRNGKey(0)
    ks = jax.random.split(key, 10)

    x = jax.random.normal(ks[0], (B, C, L), dtype=jnp.float32)

    # Deterministic synthetic parameters (shapes from nn.Conv1d / nn.BatchNorm1d).
    w1 = 0.2 * jax.random.normal(ks[1], (C, C, 5), dtype=jnp.float32)
    b1 = 0.1 * jax.random.normal(ks[2], (C,), dtype=jnp.float32)
    w2 = 0.2 * jax.random.normal(ks[3], (C, C, 1), dtype=jnp.float32)
    b2 = 0.1 * jax.random.normal(ks[4], (C,), dtype=jnp.float32)
    gamma = 1.0 + 0.1 * jax.random.normal(ks[5], (C,), dtype=jnp.float32)
    beta = 0.1 * jax.random.normal(ks[6], (C,), dtype=jnp.float32)
    w3 = 0.2 * jax.random.normal(ks[7], (C, C, 3), dtype=jnp.float32)
    b3 = 0.1 * jax.random.normal(ks[8], (C,), dtype=jnp.float32)

    out = jax.block_until_ready(residual_block(x, w1, b1, w2, b2, gamma, beta, w3, b3))
    ref = jax.block_until_ready(_reference(x, w1, b1, w2, b2, gamma, beta, w3, b3))
    np.testing.assert_allclose(np.asarray(out), np.asarray(ref), rtol=5e-3, atol=5e-3)

    print("KERNEL_OK")
</pallas_src>

<mosaic_0001>
module attributes {stable_mosaic.version = 11 : i64} {
  func.func @kernel(%arg0: memref<16x128xf32, #tpu.memory_space<vmem>>, %arg1: memref<5x16x16xf32, #tpu.memory_space<vmem>>, %arg2: memref<3x16x16xf32, #tpu.memory_space<vmem>>, %arg3: memref<16x1xf32, #tpu.memory_space<vmem>>, %arg4: memref<16x1xf32, #tpu.memory_space<vmem>>, %arg5: memref<16x1xf32, #tpu.memory_space<vmem>>, %arg6: memref<16x128xf32, #tpu.memory_space<vmem>>) attributes {dimension_semantics = [], scalar_prefetch = 0 : i64, scratch_operands = 0 : i64, tpu.core_type = #tpu.core_type<tc>} {
    %c0 = arith.constant 0 : index
    %c0_0 = arith.constant 0 : index
    %0 = vector.load %arg0[%c0, %c0_0] : memref<16x128xf32, #tpu.memory_space<vmem>>, vector<16x128xf32>
    %1 = tpu.iota {dimensions = array<i32: 1>} : vector<1x128xi32>
    %c64_i32 = arith.constant 64 : i32
    %c0_i32 = arith.constant 0 : i32
    %2 = arith.cmpi eq, %c64_i32, %c0_i32 : i32
    %c1_i32 = arith.constant 1 : i32
    %3 = arith.select %2, %c1_i32, %c64_i32 : i32
    %4 = vector.broadcast %3 : i32 to vector<1x128xi32>
    %5 = arith.remsi %1, %4 : vector<1x128xi32>
    %c0_i32_1 = arith.constant 0 : i32
    %6 = vector.broadcast %c0_i32_1 : i32 to vector<1x128xi32>
    %7 = arith.cmpi ne, %5, %6 : vector<1x128xi32>
    %c0_i32_2 = arith.constant 0 : i32
    %8 = vector.broadcast %c0_i32_2 : i32 to vector<1x128xi32>
    %9 = arith.cmpi slt, %5, %8 : vector<1x128xi32>
    %c0_i32_3 = arith.constant 0 : i32
    %10 = arith.cmpi slt, %3, %c0_i32_3 : i32
    %11 = vector.broadcast %10 : i1 to vector<1x128xi1>
    %12 = vector.broadcast %11 : vector<1x128xi1> to vector<1x128xi1>
    %13 = arith.xori %9, %12 : vector<1x128xi1>
    %14 = arith.andi %13, %7 : vector<1x128xi1>
    %15 = vector.broadcast %3 : i32 to vector<1x128xi32>
    %16 = arith.addi %5, %15 : vector<1x128xi32>
    %17 = arith.select %14, %16, %5 : vector<1x128xi1>, vector<1x128xi32>
    %c0_4 = arith.constant 0 : index
    %c0_5 = arith.constant 0 : index
    %c0_6 = arith.constant 0 : index
    %18 = vector.load %arg1[%c0_4, %c0_5, %c0_6] : memref<5x16x16xf32, #tpu.memory_space<vmem>>, vector<1x16x16xf32>
    %19 = vector.shape_cast %18 : vector<1x16x16xf32> to vector<16x16xf32>
    %cst = arith.constant dense<0.000000e+00> : vector<16x128xf32>
    %20 = tpu.matmul %19, %0, %cst {dimension_numbers = #tpu.dot_dimension_numbers<[1], [0], [0], [1], [0, 0, 1, 1], [], []>} : vector<16x16xf32>, vector<16x128xf32>, vector<16x128xf32> -> vector<16x128xf32>
    %c2_i32 = arith.constant 2 : i32
    %21 = tpu.dynamic_rotate %20 by %c2_i32 dim 1 : vector<16x128xf32>, i32 -> vector<16x128xf32>
    %c2_i32_7 = arith.constant 2 : i32
    %22 = vector.broadcast %c2_i32_7 : i32 to vector<1x128xi32>
    %23 = arith.cmpi sge, %17, %22 : vector<1x128xi32>
    %cst_8 = arith.constant 0.000000e+00 : f32
    %24 = vector.shape_cast %23 : vector<1x128xi1> to vector<1x128xi1>
    %25 = vector.broadcast %24 : vector<1x128xi1> to vector<16x128xi1>
    %26 = vector.broadcast %cst_8 : f32 to vector<16x128xf32>
    %27 = arith.select %25, %21, %26 : vector<16x128xi1>, vector<16x128xf32>
    %c1 = arith.constant 1 : index
    %c0_9 = arith.constant 0 : index
    %c0_10 = arith.constant 0 : index
    %28 = vector.load %arg1[%c1, %c0_9, %c0_10] : memref<5x16x16xf32, #tpu.memory_space<vmem>>, vector<1x16x16xf32>
    %29 = vector.shape_cast %28 : vector<1x16x16xf32> to vector<16x16xf32>
    %cst_11 = arith.constant dense<0.000000e+00> : vector<16x128xf32>
    %30 = tpu.matmul %29, %0, %cst_11 {dimension_numbers = #tpu.dot_dimension_numbers<[1], [0], [0], [1], [0, 0, 1, 1], [], []>} : vector<16x16xf32>, vector<16x128xf32>, vector<16x128xf32> -> vector<16x128xf32>
    %c1_i32_12 = arith.constant 1 : i32
    %31 = tpu.dynamic_rotate %30 by %c1_i32_12 dim 1 : vector<16x128xf32>, i32 -> vector<16x128xf32>
    %c1_i32_13 = arith.constant 1 : i32
    %32 = vector.broadcast %c1_i32_13 : i32 to vector<1x128xi32>
    %33 = arith.cmpi sge, %17, %32 : vector<1x128xi32>
    %cst_14 = arith.constant 0.000000e+00 : f32
    %34 = vector.shape_cast %33 : vector<1x128xi1> to vector<1x128xi1>
    %35 = vector.broadcast %34 : vector<1x128xi1> to vector<16x128xi1>
    %36 = vector.broadcast %cst_14 : f32 to vector<16x128xf32>
    %37 = arith.select %35, %31, %36 : vector<16x128xi1>, vector<16x128xf32>
    %38 = arith.addf %27, %37 : vector<16x128xf32>
    %c2 = arith.constant 2 : index
    %c0_15 = arith.constant 0 : index
    %c0_16 = arith.constant 0 : index
    %39 = vector.load %arg1[%c2, %c0_15, %c0_16] : memref<5x16x16xf32, #tpu.memory_space<vmem>>, vector<1x16x16xf32>
    %40 = vector.shape_cast %39 : vector<1x16x16xf32> to vector<16x16xf32>
    %cst_17 = arith.constant dense<0.000000e+00> : vector<16x128xf32>
    %41 = tpu.matmul %40, %0, %cst_17 {dimension_numbers = #tpu.dot_dimension_numbers<[1], [0], [0], [1], [0, 0, 1, 1], [], []>} : vector<16x16xf32>, vector<16x128xf32>, vector<16x128xf32> -> vector<16x128xf32>
    %42 = arith.addf %38, %41 : vector<16x128xf32>
    %c3 = arith.constant 3 : index
    %c0_18 = arith.constant 0 : index
    %c0_19 = arith.constant 0 : index
    %43 = vector.load %arg1[%c3, %c0_18, %c0_19] : memref<5x16x16xf32, #tpu.memory_space<vmem>>, vector<1x16x16xf32>
    %44 = vector.shape_cast %43 : vector<1x16x16xf32> to vector<16x16xf32>
    %cst_20 = arith.constant dense<0.000000e+00> : vector<16x128xf32>
    %45 = tpu.matmul %44, %0, %cst_20 {dimension_numbers = #tpu.dot_dimension_numbers<[1], [0], [0], [1], [0, 0, 1, 1], [], []>} : vector<16x16xf32>, vector<16x128xf32>, vector<16x128xf32> -> vector<16x128xf32>
    %c127_i32 = arith.constant 127 : i32
    %46 = tpu.dynamic_rotate %45 by %c127_i32 dim 1 : vector<16x128xf32>, i32 -> vector<16x128xf32>
    %c63_i32 = arith.constant 63 : i32
    %47 = vector.broadcast %c63_i32 : i32 to vector<1x128xi32>
    %48 = arith.cmpi slt, %17, %47 : vector<1x128xi32>
    %cst_21 = arith.constant 0.000000e+00 : f32
    %49 = vector.shape_cast %48 : vector<1x128xi1> to vector<1x128xi1>
    %50 = vector.broadcast %49 : vector<1x128xi1> to vector<16x128xi1>
    %51 = vector.broadcast %cst_21 : f32 to vector<16x128xf32>
    %52 = arith.select %50, %46, %51 : vector<16x128xi1>, vector<16x128xf32>
    %53 = arith.addf %42, %52 : vector<16x128xf32>
    %c4 = arith.constant 4 : index
    %c0_22 = arith.constant 0 : index
    %c0_23 = arith.constant 0 : index
    %54 = vector.load %arg1[%c4, %c0_22, %c0_23] : memref<5x16x16xf32, #tpu.memory_space<vmem>>, vector<1x16x16xf32>
    %55 = vector.shape_cast %54 : vector<1x16x16xf32> to vector<16x16xf32>
    %cst_24 = arith.constant dense<0.000000e+00> : vector<16x128xf32>
    %56 = tpu.matmul %55, %0, %cst_24 {dimension_numbers = #tpu.dot_dimension_numbers<[1], [0], [0], [1], [0, 0, 1, 1], [], []>} : vector<16x16xf32>, vector<16x128xf32>, vector<16x128xf32> -> vector<16x128xf32>
    %c126_i32 = arith.constant 126 : i32
    %57 = tpu.dynamic_rotate %56 by %c126_i32 dim 1 : vector<16x128xf32>, i32 -> vector<16x128xf32>
    %c62_i32 = arith.constant 62 : i32
    %58 = vector.broadcast %c62_i32 : i32 to vector<1x128xi32>
    %59 = arith.cmpi slt, %17, %58 : vector<1x128xi32>
    %cst_25 = arith.constant 0.000000e+00 : f32
    %60 = vector.shape_cast %59 : vector<1x128xi1> to vector<1x128xi1>
    %61 = vector.broadcast %60 : vector<1x128xi1> to vector<16x128xi1>
    %62 = vector.broadcast %cst_25 : f32 to vector<16x128xf32>
    %63 = arith.select %61, %57, %62 : vector<16x128xi1>, vector<16x128xf32>
    %64 = arith.addf %53, %63 : vector<16x128xf32>
    %cst_26 = arith.constant dense<0.000000e+00> : vector<16xf32>
    %65 = vector.multi_reduction <add>, %64, %cst_26 [1] : vector<16x128xf32> to vector<16xf32>
    %66 = vector.shape_cast %65 : vector<16xf32> to vector<16x1xf32>
    %cst_27 = arith.constant 1.280000e+02 : f32
    %67 = vector.broadcast %cst_27 : f32 to vector<16x1xf32>
    %68 = arith.divf %66, %67 : vector<16x1xf32>
    %69 = arith.mulf %64, %64 : vector<16x128xf32>
    %cst_28 = arith.constant dense<0.000000e+00> : vector<16xf32>
    %70 = vector.multi_reduction <add>, %69, %cst_28 [1] : vector<16x128xf32> to vector<16xf32>
    %71 = vector.shape_cast %70 : vector<16xf32> to vector<16x1xf32>
    %cst_29 = arith.constant 1.280000e+02 : f32
    %72 = vector.broadcast %cst_29 : f32 to vector<16x1xf32>
    %73 = arith.divf %71, %72 : vector<16x1xf32>
    %74 = arith.mulf %68, %68 : vector<16x1xf32>
    %75 = arith.subf %73, %74 : vector<16x1xf32>
    %76 = vector.broadcast %68 : vector<16x1xf32> to vector<16x128xf32>
    %77 = arith.subf %64, %76 : vector<16x128xf32>
    %cst_30 = arith.constant 9.99999974E-6 : f32
    %78 = vector.broadcast %cst_30 : f32 to vector<16x1xf32>
    %79 = arith.addf %75, %78 : vector<16x1xf32>
    %80 = math.rsqrt %79 : vector<16x1xf32>
    %81 = vector.broadcast %80 : vector<16x1xf32> to vector<16x128xf32>
    %82 = arith.mulf %77, %81 : vector<16x128xf32>
    %c0_31 = arith.constant 0 : index
    %c0_32 = arith.constant 0 : index
    %83 = vector.load %arg3[%c0_31, %c0_32] : memref<16x1xf32, #tpu.memory_space<vmem>>, vector<16x1xf32>
    %84 = vector.broadcast %83 : vector<16x1xf32> to vector<16x128xf32>
    %85 = arith.mulf %82, %84 : vector<16x128xf32>
    %c0_33 = arith.constant 0 : index
    %c0_34 = arith.constant 0 : index
    %86 = vector.load %arg4[%c0_33, %c0_34] : memref<16x1xf32, #tpu.memory_space<vmem>>, vector<16x1xf32>
    %87 = vector.broadcast %86 : vector<16x1xf32> to vector<16x128xf32>
    %88 = arith.addf %85, %87 : vector<16x128xf32>
    %89 = arith.negf %88 : vector<16x128xf32>
    %90 = math.exp %89 : vector<16x128xf32>
    %cst_35 = arith.constant 1.000000e+00 : f32
    %91 = vector.broadcast %cst_35 : f32 to vector<16x128xf32>
    %92 = arith.addf %91, %90 : vector<16x128xf32>
    %93 = arith.divf %91, %92 : vector<16x128xf32>
    %94 = arith.mulf %88, %93 : vector<16x128xf32>
    %c0_36 = arith.constant 0 : index
    %c0_37 = arith.constant 0 : index
    %c0_38 = arith.constant 0 : index
    %95 = vector.load %arg2[%c0_36, %c0_37, %c0_38] : memref<3x16x16xf32, #tpu.memory_space<vmem>>, vector<1x16x16xf32>
    %96 = vector.shape_cast %95 : vector<1x16x16xf32> to vector<16x16xf32>
    %cst_39 = arith.constant dense<0.000000e+00> : vector<16x128xf32>
    %97 = tpu.matmul %96, %94, %cst_39 {dimension_numbers = #tpu.dot_dimension_numbers<[1], [0], [0], [1], [0, 0, 1, 1], [], []>} : vector<16x16xf32>, vector<16x128xf32>, vector<16x128xf32> -> vector<16x128xf32>
    %c1_i32_40 = arith.constant 1 : i32
    %98 = tpu.dynamic_rotate %97 by %c1_i32_40 dim 1 : vector<16x128xf32>, i32 -> vector<16x128xf32>
    %c1_i32_41 = arith.constant 1 : i32
    %99 = vector.broadcast %c1_i32_41 : i32 to vector<1x128xi32>
    %100 = arith.cmpi sge, %17, %99 : vector<1x128xi32>
    %cst_42 = arith.constant 0.000000e+00 : f32
    %101 = vector.shape_cast %100 : vector<1x128xi1> to vector<1x128xi1>
    %102 = vector.broadcast %101 : vector<1x128xi1> to vector<16x128xi1>
    %103 = vector.broadcast %cst_42 : f32 to vector<16x128xf32>
    %104 = arith.select %102, %98, %103 : vector<16x128xi1>, vector<16x128xf32>
    %c1_43 = arith.constant 1 : index
    %c0_44 = arith.constant 0 : index
    %c0_45 = arith.constant 0 : index
    %105 = vector.load %arg2[%c1_43, %c0_44, %c0_45] : memref<3x16x16xf32, #tpu.memory_space<vmem>>, vector<1x16x16xf32>
    %106 = vector.shape_cast %105 : vector<1x16x16xf32> to vector<16x16xf32>
    %cst_46 = arith.constant dense<0.000000e+00> : vector<16x128xf32>
    %107 = tpu.matmul %106, %94, %cst_46 {dimension_numbers = #tpu.dot_dimension_numbers<[1], [0], [0], [1], [0, 0, 1, 1], [], []>} : vector<16x16xf32>, vector<16x128xf32>, vector<16x128xf32> -> vector<16x128xf32>
    %108 = arith.addf %104, %107 : vector<16x128xf32>
    %c2_47 = arith.constant 2 : index
    %c0_48 = arith.constant 0 : index
    %c0_49 = arith.constant 0 : index
    %109 = vector.load %arg2[%c2_47, %c0_48, %c0_49] : memref<3x16x16xf32, #tpu.memory_space<vmem>>, vector<1x16x16xf32>
    %110 = vector.shape_cast %109 : vector<1x16x16xf32> to vector<16x16xf32>
    %cst_50 = arith.constant dense<0.000000e+00> : vector<16x128xf32>
    %111 = tpu.matmul %110, %94, %cst_50 {dimension_numbers = #tpu.dot_dimension_numbers<[1], [0], [0], [1], [0, 0, 1, 1], [], []>} : vector<16x16xf32>, vector<16x128xf32>, vector<16x128xf32> -> vector<16x128xf32>
    %c127_i32_51 = arith.constant 127 : i32
    %112 = tpu.dynamic_rotate %111 by %c127_i32_51 dim 1 : vector<16x128xf32>, i32 -> vector<16x128xf32>
    %c63_i32_52 = arith.constant 63 : i32
    %113 = vector.broadcast %c63_i32_52 : i32 to vector<1x128xi32>
    %114 = arith.cmpi slt, %17, %113 : vector<1x128xi32>
    %cst_53 = arith.constant 0.000000e+00 : f32
    %115 = vector.shape_cast %114 : vector<1x128xi1> to vector<1x128xi1>
    %116 = vector.broadcast %115 : vector<1x128xi1> to vector<16x128xi1>
    %117 = vector.broadcast %cst_53 : f32 to vector<16x128xf32>
    %118 = arith.select %116, %112, %117 : vector<16x128xi1>, vector<16x128xf32>
    %119 = arith.addf %108, %118 : vector<16x128xf32>
    %c0_54 = arith.constant 0 : index
    %c0_55 = arith.constant 0 : index
    %120 = vector.load %arg5[%c0_54, %c0_55] : memref<16x1xf32, #tpu.memory_space<vmem>>, vector<16x1xf32>
    %121 = vector.broadcast %120 : vector<16x1xf32> to vector<16x128xf32>
    %122 = arith.addf %119, %121 : vector<16x128xf32>
    %cst_56 = arith.constant 1.000000e-01 : f32
    %123 = vector.broadcast %cst_56 : f32 to vector<16x128xf32>
    %124 = arith.mulf %123, %122 : vector<16x128xf32>
    %125 = arith.addf %0, %124 : vector<16x128xf32>
    %c0_57 = arith.constant 0 : index
    %c0_58 = arith.constant 0 : index
    %126 = vector.load %arg6[%c0_57, %c0_58] : memref<16x128xf32, #tpu.memory_space<vmem>>, vector<16x128xf32>
    tpu.vector_store %arg6[%c0_57, %c0_58], %125 {strides = array<i32>} : memref<16x128xf32, #tpu.memory_space<vmem>>, vector<16x128xf32>,
    return
  }
}

</mosaic_0001>

<llo_original>
// kernel: residual_block.1
$region0: #{residual_block.1}
  #allocation0 [shape = 'u32[]', space=smem, size = 0x4, offset = 0x4, fixed_abs, tag = 'smem constant byte address 0x4 - core index']
  #allocation1 [shape = 'u32[144,128]{1,0:T(1,128)}', space=vmem, size = 0x12000, scoped, tag = 'internal scratch']
  %s0 = inlined_call_operand.vmem [shape: f32[16,128], index: 0, kind: input, shape index: {}]
  %s1 = inlined_call_operand.vmem [shape: f32[5,16,16], index: 1, kind: input, shape index: {}]
  %s2 = inlined_call_operand.vmem [shape: f32[3,16,16], index: 2, kind: input, shape index: {}]
  %s3 = inlined_call_operand.vmem [shape: f32[16,1], index: 3, kind: input, shape index: {}]
  %s4 = inlined_call_operand.vmem [shape: f32[16,1], index: 4, kind: input, shape index: {}]
  %s5 = inlined_call_operand.vmem [shape: f32[16,1], index: 5, kind: input, shape index: {}]
  %s6 = inlined_call_operand.vmem [shape: f32[16,128], index: 6, kind: output, shape index: {}]
  %s7 = sld [smem:[#allocation0]]
  $region34: #{residual_block.1} parent=0
    _
  %s9 = ssub.s32 1, %s7
  %s10 = scalar_select 0, %s9, %s7
  // Predicated region
  $region2: #{residual_block.1} parent=0 // pred_check
    _
  $region3: #{residual_block.1} parent=0 // pred_check_branch
    %12 = sbr.rel (0) target = $region5
  $region4: #{residual_block.1} parent=0 // pred_region
    _
  $region5: #{residual_block.1} parent=0 // pred_fallthru
    _
  // Predicated region
  $region6: #{residual_block.1} parent=0 // pred_check
    _
  $region7: #{residual_block.1} parent=0 // pred_check_branch
    %14 = sbr.rel (0) target = $region9
  $region8: #{residual_block.1} parent=0 // pred_region
    _
  $region9: #{residual_block.1} parent=0 // pred_fallthru
    _
  // Predicated region
  $region10: #{residual_block.1} parent=0 // pred_check
    _
  $region11: #{residual_block.1} parent=0 // pred_check_branch
    %16 = sbr.rel (0) target = $region13
  $region12: #{residual_block.1} parent=0 // pred_region
    _
  $region13: #{residual_block.1} parent=0 // pred_fallthru
    _
  // Predicated region
  $region14: #{residual_block.1} parent=0 // pred_check
    _
  $region15: #{residual_block.1} parent=0 // pred_check_branch
    %18 = sbr.rel (0) target = $region17
  $region16: #{residual_block.1} parent=0 // pred_region
    _
  $region17: #{residual_block.1} parent=0 // pred_fallthru
    _
  // Predicated region
  $region18: #{residual_block.1} parent=0 // pred_check
    _
  $region19: #{residual_block.1} parent=0 // pred_check_branch
    %20 = sbr.rel (0) target = $region21
  $region20: #{residual_block.1} parent=0 // pred_region
    _
  $region21: #{residual_block.1} parent=0 // pred_fallthru
    _
  // Predicated region
  $region22: #{residual_block.1} parent=0 // pred_check
    _
  $region23: #{residual_block.1} parent=0 // pred_check_branch
    %22 = sbr.rel (0) target = $region25
  $region24: #{residual_block.1} parent=0 // pred_region
    _
  $region25: #{residual_block.1} parent=0 // pred_fallthru
    _
  %v23 = vld [vmem:[%s0] sm:$0xff]
  %v24 = vld [vmem:[%s0 + $0x8] sm:$0xff]
  %v25 = vlaneseq
  %v26 = vand.u32 %v25, 127
  %vm27 = vcmp.lt.s32.totalorder %v26, 0
  %v28 = vsub.s32 0, %v26
  %v29 = vsel %vm27, %v28, %v26
  %v30 = vshrl.u32 %v29, 6
  %v31 = vand.u32 %v29, 63
  %v32 = vsub.s32 0, %v31
  %v33 = vsel %vm27, %v32, %v31
  %vm34 = vcmp.ne.s32.totalorder %v33, 0
  %vm35 = vcmp.lt.s32.totalorder %v33, 0
  %vm36 = vmand %vm35, %vm34
  %v37 = vadd.s32 %v33, 64
  %v38 = vsel %vm36, %v37, %v33
  %v39 = vld [vmem:[%s1] sm:$0xff]
  %v40 = vld [vmem:[%s1 + $0x8] sm:$0xff]
  %vm41 = vcmask 130048
  %v43 = vsel %vm41, %v39, 0
  %v46 = vsel %vm41, %v40, 0
  %48 = vmatprep.subr.mxu0 0.0
  %49 = vmatpush1.msra.mxu0 %v23
  %50 = vmatprep.subr.mxu0 0.0
  %51 = vmatpush1.msra.mxu0 %v24
  %52 = vmatprep.subr.mxu0 0.0
  %53 = vmatpush1.msra.mxu0 0.0
  %54 = vmatprep.subr.mxu0 0.0
  %55 = vmatpush1.msra.mxu0 0.0
  %56 = vmatprep.subr.mxu0 0.0
  %57 = vmatpush1.msra.mxu0 0.0
  %58 = vmatprep.subr.mxu0 0.0
  %59 = vmatpush1.msra.mxu0 0.0
  %60 = vmatprep.subr.mxu0 0.0
  %61 = vmatpush1.msra.mxu0 0.0
  %62 = vmatprep.subr.mxu0 0.0
  %63 = vmatpush1.msra.mxu0 0.0
  %64 = vmatprep.subr.mxu0 0.0
  %65 = vmatpush1.msra.mxu0 0.0
  %66 = vmatprep.subr.mxu0 0.0
  %67 = vmatpush1.msra.mxu0 0.0
  %68 = vmatprep.subr.mxu0 0.0
  %69 = vmatpush1.msra.mxu0 0.0
  %70 = vmatprep.subr.mxu0 0.0
  %71 = vmatpush1.msra.mxu0 0.0
  %72 = vmatprep.subr.mxu0 0.0
  %73 = vmatpush1.msra.mxu0 0.0
  %74 = vmatprep.subr.mxu0 0.0
  %75 = vmatpush1.msra.mxu0 0.0
  %76 = vmatprep.subr.mxu0 0.0
  %77 = vmatpush1.msra.mxu0 0.0
  %78 = vmatprep.subr.mxu0 0.0
  %79 = vmatpush1.msra.mxu0 0.0
  %80 = vmatprep.subr.mxu0 0.0
  %81 = vmatpush1.msra.mxu0 0.0
  %82 = vmatprep.subr.mxu0 0.0
  %83 = vmatpush1.msra.mxu0 0.0
  %84 = vmatprep.subr.mxu0 0.0
  %85 = vmatpush1.msra.mxu0 0.0
  %86 = vmatprep.subr.mxu0 0.0
  %87 = vmatpush1.msra.mxu0 0.0
  %88 = vmatprep.subr.mxu0 0.0
  %89 = vmatpush1.msra.mxu0 0.0
  %90 = vmatprep.subr.mxu0 0.0
  %91 = vmatpush1.msra.mxu0 0.0
  %92 = vmatprep.subr.mxu0 0.0
  %93 = vmatpush1.msra.mxu0 0.0
  %94 = vmatprep.subr.mxu0 0.0
  %95 = vmatpush1.msra.mxu0 0.0
  %96 = vmatprep.subr.mxu0 0.0
  %97 = vmatpush1.msra.mxu0 0.0
  %98 = vmatprep.subr.mxu0 0.0
  %99 = vmatpush1.msra.mxu0 0.0
  %100 = vmatprep.subr.mxu0 0.0
  %101 = vmatpush1.msra.mxu0 0.0
  %102 = vmatprep.subr.mxu0 0.0
  %103 = vmatpush1.msra.mxu0 0.0
  %104 = vmatprep.subr.mxu0 0.0
  %105 = vmatpush1.msra.mxu0 0.0
  %106 = vmatprep.subr.mxu0 0.0
  %107 = vmatpush1.msra.mxu0 0.0
  %108 = vmatprep.subr.mxu0 0.0
  %109 = vmatpush1.msra.mxu0 0.0
  %110 = vmatprep.subr.mxu0 0.0
  %111 = vmatpush1.msra.mxu0 0.0
  %112 = vmatprep.mubr.f32.mxu0 0.0
  %113 = vmatmul.mubr.f32.gmra.mrb[0].mxu0 %v43
  %v114 = vpop.f32.mrb[0].mxu0
  %v115 = vadd.f32 0.0, %v114
  %v116 = vpop.f32.mrb[0].mxu0
  %117 = vmatprep.mubr.f32.mxu0 0.0
  %118 = vmatmul.mubr.f32.gmra.mrb[0].mxu0 %v46
  %v119 = vpop.f32.mrb[0].mxu0
  %v120 = vadd.f32 0.0, %v119
  %v121 = vpop.f32.mrb[0].mxu0
  %122 = vdwg.mxu0
  %123 = vrot.lane.b32.xlu0 %v115, 2
  %v124 = vpop.permute.xlu0 %123
  %125 = vrot.lane.b32.xlu0 %v120, 2
  %v126 = vpop.permute.xlu0 %125
  %vm127 = vcmp.ge.s32.totalorder %v38, 2
  %v128 = vsel %vm127, 1, 0
  %vm129 = vcmp.eq.s32.totalorder %v128, 1
  %v130 = vsel %vm129, %v124, 0.0
  %v131 = vsel %vm129, %v126, 0.0
  %s132 = scalar_lea.vmem %s1, 16
  %v133 = vld [vmem:[%s132] sm:$0xff]
  %v134 = vld [vmem:[%s132 + $0x8] sm:$0xff]
  %v136 = vsel %vm41, %v133, 0
  %v139 = vsel %vm41, %v134, 0
  %141 = vmatprep.subr.mxu0 0.0
  %142 = vmatpush1.msra.mxu0 %v23
  %143 = vmatprep.subr.mxu0 0.0
  %144 = vmatpush1.msra.mxu0 %v24
  %145 = vmatprep.subr.mxu0 0.0
  %146 = vmatpush1.msra.mxu0 0.0
  %147 = vmatprep.subr.mxu0 0.0
  %148 = vmatpush1.msra.mxu0 0.0
  %149 = vmatprep.subr.mxu0 0.0
  %150 = vmatpush1.msra.mxu0 0.0
  %151 = vmatprep.subr.mxu0 0.0
  %152 = vmatpush1.msra.mxu0 0.0
  %153 = vmatprep.subr.mxu0 0.0
  %154 = vmatpush1.msra.mxu0 0.0
  %155 = vmatprep.subr.mxu0 0.0
  %156 = vmatpush1.msra.mxu0 0.0
  %157 = vmatprep.subr.mxu0 0.0
  %158 = vmatpush1.msra.mxu0 0.0
  %159 = vmatprep.subr.mxu0 0.0
  %160 = vmatpush1.msra.mxu0 0.0
  %161 = vmatprep.subr.mxu0 0.0
  %162 = vmatpush1.msra.mxu0 0.0
  %163 = vmatprep.subr.mxu0 0.0
  %164 = vmatpush1.msra.mxu0 0.0
  %165 = vmatprep.subr.mxu0 0.0
  %166 = vmatpush1.msra.mxu0 0.0
  %167 = vmatprep.subr.mxu0 0.0
  %168 = vmatpush1.msra.mxu0 0.0
  %169 = vmatprep.subr.mxu0 0.0
  %170 = vmatpush1.msra.mxu0 0.0
  %171 = vmatprep.subr.mxu0 0.0
  %172 = vmatpush1.msra.mxu0 0.0
  %173 = vmatprep.subr.mxu0 0.0
  %174 = vmatpush1.msra.mxu0 0.0
  %175 = vmatprep.subr.mxu0 0.0
  %176 = vmatpush1.msra.mxu0 0.0
  %177 = vmatprep.subr.mxu0 0.0
  %178 = vmatpush1.msra.mxu0 0.0
  %179 = vmatprep.subr.mxu0 0.0
  %180 = vmatpush1.msra.mxu0 0.0
  %181 = vmatprep.subr.mxu0 0.0
  %182 = vmatpush1.msra.mxu0 0.0
  %183 = vmatprep.subr.mxu0 0.0
  %184 = vmatpush1.msra.mxu0 0.0
  %185 = vmatprep.subr.mxu0 0.0
  %186 = vmatpush1.msra.mxu0 0.0
  %187 = vmatprep.subr.mxu0 0.0
  %188 = vmatpush1.msra.mxu0 0.0
  %189 = vmatprep.subr.mxu0 0.0
  %190 = vmatpush1.msra.mxu0 0.0
  %191 = vmatprep.subr.mxu0 0.0
  %192 = vmatpush1.msra.mxu0 0.0
  %193 = vmatprep.subr.mxu0 0.0
  %194 = vmatpush1.msra.mxu0 0.0
  %195 = vmatprep.subr.mxu0 0.0
  %196 = vmatpush1.msra.mxu0 0.0
  %197 = vmatprep.subr.mxu0 0.0
  %198 = vmatpush1.msra.mxu0 0.0
  %199 = vmatprep.subr.mxu0 0.0
  %200 = vmatpush1.msra.mxu0 0.0
  %201 = vmatprep.subr.mxu0 0.0
  %202 = vmatpush1.msra.mxu0 0.0
  %203 = vmatprep.subr.mxu0 0.0
  %204 = vmatpush1.msra.mxu0 0.0
  %205 = vmatprep.mubr.f32.mxu0 0.0
  %206 = vmatmul.mubr.f32.gmra.mrb[0].mxu0 %v136
  %v207 = vpop.f32.mrb[0].mxu0
  %v208 = vadd.f32 0.0, %v207
  %v209 = vpop.f32.mrb[0].mxu0
  %210 = vmatprep.mubr.f32.mxu0 0.0
  %211 = vmatmul.mubr.f32.gmra.mrb[0].mxu0 %v139
  %v212 = vpop.f32.mrb[0].mxu0
  %v213 = vadd.f32 0.0, %v212
  %v214 = vpop.f32.mrb[0].mxu0
  %215 = vdwg.mxu0
  %216 = vrot.lane.b32.xlu0 %v208, 1
  %v217 = vpop.permute.xlu0 %216
  %218 = vrot.lane.b32.xlu0 %v213, 1
  %v219 = vpop.permute.xlu0 %218
  %vm220 = vcmp.ge.s32.totalorder %v38, 1
  %v221 = vsel %vm220, 1, 0
  %vm222 = vcmp.eq.s32.totalorder %v221, 1
  %v223 = vsel %vm222, %v217, 0.0
  %v224 = vsel %vm222, %v219, 0.0
  %v225 = vadd.f32 %v130, %v223
  %v226 = vadd.f32 %v131, %v224
  %s227 = scalar_lea.vmem %s1, 32
  %v228 = vld [vmem:[%s227] sm:$0xff]
  %v229 = vld [vmem:[%s227 + $0x8] sm:$0xff]
  %v231 = vsel %vm41, %v228, 0
  %v234 = vsel %vm41, %v229, 0
  %236 = vmatprep.subr.mxu0 0.0
  %237 = vmatpush1.msra.mxu0 %v23
  %238 = vmatprep.subr.mxu0 0.0
  %239 = vmatpush1.msra.mxu0 %v24
  %240 = vmatprep.subr.mxu0 0.0
  %241 = vmatpush1.msra.mxu0 0.0
  %242 = vmatprep.subr.mxu0 0.0
  %243 = vmatpush1.msra.mxu0 0.0
  %244 = vmatprep.subr.mxu0 0.0
  %245 = vmatpush1.msra.mxu0 0.0
  %246 = vmatprep.subr.mxu0 0.0
  %247 = vmatpush1.msra.mxu0 0.0
  %248 = vmatprep.subr.mxu0 0.0
  %249 = vmatpush1.msra.mxu0 0.0
  %250 = vmatprep.subr.mxu0 0.0
  %251 = vmatpush1.msra.mxu0 0.0
  %252 = vmatprep.subr.mxu0 0.0
  %253 = vmatpush1.msra.mxu0 0.0
  %254 = vmatprep.subr.mxu0 0.0
  %255 = vmatpush1.msra.mxu0 0.0
  %256 = vmatprep.subr.mxu0 0.0
  %257 = vmatpush1.msra.mxu0 0.0
  %258 = vmatprep.subr.mxu0 0.0
  %259 = vmatpush1.msra.mxu0 0.0
  %260 = vmatprep.subr.mxu0 0.0
  %261 = vmatpush1.msra.mxu0 0.0
  %262 = vmatprep.subr.mxu0 0.0
  %263 = vmatpush1.msra.mxu0 0.0
  %264 = vmatprep.subr.mxu0 0.0
  %265 = vmatpush1.msra.mxu0 0.0
  %266 = vmatprep.subr.mxu0 0.0
  %267 = vmatpush1.msra.mxu0 0.0
  %268 = vmatprep.subr.mxu0 0.0
  %269 = vmatpush1.msra.mxu0 0.0
  %270 = vmatprep.subr.mxu0 0.0
  %271 = vmatpush1.msra.mxu0 0.0
  %272 = vmatprep.subr.mxu0 0.0
  %273 = vmatpush1.msra.mxu0 0.0
  %274 = vmatprep.subr.mxu0 0.0
  %275 = vmatpush1.msra.mxu0 0.0
  %276 = vmatprep.subr.mxu0 0.0
  %277 = vmatpush1.msra.mxu0 0.0
  %278 = vmatprep.subr.mxu0 0.0
  %279 = vmatpush1.msra.mxu0 0.0
  %280 = vmatprep.subr.mxu0 0.0
  %281 = vmatpush1.msra.mxu0 0.0
  %282 = vmatprep.subr.mxu0 0.0
  %283 = vmatpush1.msra.mxu0 0.0
  %284 = vmatprep.subr.mxu0 0.0
  %285 = vmatpush1.msra.mxu0 0.0
  %286 = vmatprep.subr.mxu0 0.0
  %287 = vmatpush1.msra.mxu0 0.0
  %288 = vmatprep.subr.mxu0 0.0
  %289 = vmatpush1.msra.mxu0 0.0
  %290 = vmatprep.subr.mxu0 0.0
  %291 = vmatpush1.msra.mxu0 0.0
  %292 = vmatprep.subr.mxu0 0.0
  %293 = vmatpush1.msra.mxu0 0.0
  %294 = vmatprep.subr.mxu0 0.0
  %295 = vmatpush1.msra.mxu0 0.0
  %296 = vmatprep.subr.mxu0 0.0
  %297 = vmatpush1.msra.mxu0 0.0
  %298 = vmatprep.subr.mxu0 0.0
  %299 = vmatpush1.msra.mxu0 0.0
  %300 = vmatprep.mubr.f32.mxu0 0.0
  %301 = vmatmul.mubr.f32.gmra.mrb[0].mxu0 %v231
  %v302 = vpop.f32.mrb[0].mxu0
  %v303 = vadd.f32 0.0, %v302
  %v304 = vpop.f32.mrb[0].mxu0
  %305 = vmatprep.mubr.f32.mxu0 0.0
  %306 = vmatmul.mubr.f32.gmra.mrb[0].mxu0 %v234
  %v307 = vpop.f32.mrb[0].mxu0
  %v308 = vadd.f32 0.0, %v307
  %v309 = vpop.f32.mrb[0].mxu0
  %310 = vdwg.mxu0
  %v311 = vadd.f32 %v225, %v303
  %v312 = vadd.f32 %v226, %v308
  %s313 = scalar_lea.vmem %s1, 48
  %v314 = vld [vmem:[%s313] sm:$0xff]
  %v315 = vld [vmem:[%s313 + $0x8] sm:$0xff]
  %v317 = vsel %vm41, %v314, 0
  %v320 = vsel %vm41, %v315, 0
  %322 = vmatprep.subr.mxu0 0.0
  %323 = vmatpush1.msra.mxu0 %v23
  %324 = vmatprep.subr.mxu0 0.0
  %325 = vmatpush1.msra.mxu0 %v24
  %326 = vmatprep.subr.mxu0 0.0
  %327 = vmatpush1.msra.mxu0 0.0
  %328 = vmatprep.subr.mxu0 0.0
  %329 = vmatpush1.msra.mxu0 0.0
  %330 = vmatprep.subr.mxu0 0.0
  %331 = vmatpush1.msra.mxu0 0.0
  %332 = vmatprep.subr.mxu0 0.0
  %333 = vmatpush1.msra.mxu0 0.0
  %334 = vmatprep.subr.mxu0 0.0
  %335 = vmatpush1.msra.mxu0 0.0
  %336 = vmatprep.subr.mxu0 0.0
  %337 = vmatpush1.msra.mxu0 0.0
  %338 = vmatprep.subr.mxu0 0.0
  %339 = vmatpush1.msra.mxu0 0.0
  %340 = vmatprep.subr.mxu0 0.0
  %341 = vmatpush1.msra.mxu0 0.0
  %342 = vmatprep.subr.mxu0 0.0
  %343 = vmatpush1.msra.mxu0 0.0
  %344 = vmatprep.subr.mxu0 0.0
  %345 = vmatpush1.msra.mxu0 0.0
  %346 = vmatprep.subr.mxu0 0.0
  %347 = vmatpush1.msra.mxu0 0.0
  %348 = vmatprep.subr.mxu0 0.0
  %349 = vmatpush1.msra.mxu0 0.0
  %350 = vmatprep.subr.mxu0 0.0
  %351 = vmatpush1.msra.mxu0 0.0
  %352 = vmatprep.subr.mxu0 0.0
  %353 = vmatpush1.msra.mxu0 0.0
  %354 = vmatprep.subr.mxu0 0.0
  %355 = vmatpush1.msra.mxu0 0.0
  %356 = vmatprep.subr.mxu0 0.0
  %357 = vmatpush1.msra.mxu0 0.0
  %358 = vmatprep.subr.mxu0 0.0
  %359 = vmatpush1.msra.mxu0 0.0
  %360 = vmatprep.subr.mxu0 0.0
  %361 = vmatpush1.msra.mxu0 0.0
  %362 = vmatprep.subr.mxu0 0.0
  %363 = vmatpush1.msra.mxu0 0.0
  %364 = vmatprep.subr.mxu0 0.0
  %365 = vmatpush1.msra.mxu0 0.0
  %366 = vmatprep.subr.mxu0 0.0
  %367 = vmatpush1.msra.mxu0 0.0
  %368 = vmatprep.subr.mxu0 0.0
  %369 = vmatpush1.msra.mxu0 0.0
  %370 = vmatprep.subr.mxu0 0.0
  %371 = vmatpush1.msra.mxu0 0.0
  %372 = vmatprep.subr.mxu0 0.0
  %373 = vmatpush1.msra.mxu0 0.0
  %374 = vmatprep.subr.mxu0 0.0
  %375 = vmatpush1.msra.mxu0 0.0
  %376 = vmatprep.subr.mxu0 0.0
  %377 = vmatpush1.msra.mxu0 0.0
  %378 = vmatprep.subr.mxu0 0.0
  %379 = vmatpush1.msra.mxu0 0.0
  %380 = vmatprep.subr.mxu0 0.0
  %381 = vmatpush1.msra.mxu0 0.0
  %382 = vmatprep.subr.mxu0 0.0
  %383 = vmatpush1.msra.mxu0 0.0
  %384 = vmatprep.subr.mxu0 0.0
  %385 = vmatpush1.msra.mxu0 0.0
  %386 = vmatprep.mubr.f32.mxu0 0.0
  %387 = vmatmul.mubr.f32.gmra.mrb[0].mxu0 %v317
  %v388 = vpop.f32.mrb[0].mxu0
  %v389 = vadd.f32 0.0, %v388
  %v390 = vpop.f32.mrb[0].mxu0
  %391 = vmatprep.mubr.f32.mxu0 0.0
  %392 = vmatmul.mubr.f32.gmra.mrb[0].mxu0 %v320
  %v393 = vpop.f32.mrb[0].mxu0
  %v394 = vadd.f32 0.0, %v393
  %v395 = vpop.f32.mrb[0].mxu0
  %396 = vdwg.mxu0
  %397 = vrot.lane.b32.xlu0 %v389, 127
  %v398 = vpop.permute.xlu0 %397
  %399 = vrot.lane.b32.xlu0 %v394, 127
  %v400 = vpop.permute.xlu0 %399
  %vm401 = vcmp.lt.s32.totalorder %v38, 63
  %v402 = vsel %vm401, 1, 0
  %vm403 = vcmp.eq.s32.totalorder %v402, 1
  %v404 = vsel %vm403, %v398, 0.0
  %v405 = vsel %vm403, %v400, 0.0
  %v406 = vadd.f32 %v311, %v404
  %v407 = vadd.f32 %v312, %v405
  %s408 = scalar_lea.vmem %s1, 64
  %v409 = vld [vmem:[%s408] sm:$0xff]
  %v410 = vld [vmem:[%s408 + $0x8] sm:$0xff]
  %v412 = vsel %vm41, %v409, 0
  %v415 = vsel %vm41, %v410, 0
  %417 = vmatprep.subr.mxu0 0.0
  %418 = vmatpush1.msra.mxu0 %v23
  %419 = vmatprep.subr.mxu0 0.0
  %420 = vmatpush1.msra.mxu0 %v24
  %421 = vmatprep.subr.mxu0 0.0
  %422 = vmatpush1.msra.mxu0 0.0
  %423 = vmatprep.subr.mxu0 0.0
  %424 = vmatpush1.msra.mxu0 0.0
  %425 = vmatprep.subr.mxu0 0.0
  %426 = vmatpush1.msra.mxu0 0.0
  %427 = vmatprep.subr.mxu0 0.0
  %428 = vmatpush1.msra.mxu0 0.0
  %429 = vmatprep.subr.mxu0 0.0
  %430 = vmatpush1.msra.mxu0 0.0
  %431 = vmatprep.subr.mxu0 0.0
  %432 = vmatpush1.msra.mxu0 0.0
  %433 = vmatprep.subr.mxu0 0.0
  %434 = vmatpush1.msra.mxu0 0.0
  %435 = vmatprep.subr.mxu0 0.0
  %436 = vmatpush1.msra.mxu0 0.0
  %437 = vmatprep.subr.mxu0 0.0
  %438 = vmatpush1.msra.mxu0 0.0
  %439 = vmatprep.subr.mxu0 0.0
  %440 = vmatpush1.msra.mxu0 0.0
  %441 = vmatprep.subr.mxu0 0.0
  %442 = vmatpush1.msra.mxu0 0.0
  %443 = vmatprep.subr.mxu0 0.0
  %444 = vmatpush1.msra.mxu0 0.0
  %445 = vmatprep.subr.mxu0 0.0
  %446 = vmatpush1.msra.mxu0 0.0
  %447 = vmatprep.subr.mxu0 0.0
  %448 = vmatpush1.msra.mxu0 0.0
  %449 = vmatprep.subr.mxu0 0.0
  %450 = vmatpush1.msra.mxu0 0.0
  %451 = vmatprep.subr.mxu0 0.0
  %452 = vmatpush1.msra.mxu0 0.0
  %453 = vmatprep.subr.mxu0 0.0
  %454 = vmatpush1.msra.mxu0 0.0
  %455 = vmatprep.subr.mxu0 0.0
  %456 = vmatpush1.msra.mxu0 0.0
  %457 = vmatprep.subr.mxu0 0.0
  %458 = vmatpush1.msra.mxu0 0.0
  %459 = vmatprep.subr.mxu0 0.0
  %460 = vmatpush1.msra.mxu0 0.0
  %461 = vmatprep.subr.mxu0 0.0
  %462 = vmatpush1.msra.mxu0 0.0
  %463 = vmatprep.subr.mxu0 0.0
  %464 = vmatpush1.msra.mxu0 0.0
  %465 = vmatprep.subr.mxu0 0.0
  %466 = vmatpush1.msra.mxu0 0.0
  %467 = vmatprep.subr.mxu0 0.0
  %468 = vmatpush1.msra.mxu0 0.0
  %469 = vmatprep.subr.mxu0 0.0
  %470 = vmatpush1.msra.mxu0 0.0
  %471 = vmatprep.subr.mxu0 0.0
  %472 = vmatpush1.msra.mxu0 0.0
  %473 = vmatprep.subr.mxu0 0.0
  %474 = vmatpush1.msra.mxu0 0.0
  %475 = vmatprep.subr.mxu0 0.0
  %476 = vmatpush1.msra.mxu0 0.0
  %477 = vmatprep.subr.mxu0 0.0
  %478 = vmatpush1.msra.mxu0 0.0
  %479 = vmatprep.subr.mxu0 0.0
  %480 = vmatpush1.msra.mxu0 0.0
  %481 = vmatprep.mubr.f32.mxu0 0.0
  %482 = vmatmul.mubr.f32.gmra.mrb[0].mxu0 %v412
  %v483 = vpop.f32.mrb[0].mxu0
  %v484 = vadd.f32 0.0, %v483
  %v485 = vpop.f32.mrb[0].mxu0
  %486 = vmatprep.mubr.f32.mxu0 0.0
  %487 = vmatmul.mubr.f32.gmra.mrb[0].mxu0 %v415
  %v488 = vpop.f32.mrb[0].mxu0
  %v489 = vadd.f32 0.0, %v488
  %v490 = vpop.f32.mrb[0].mxu0
  %491 = vdwg.mxu0
  %492 = vrot.lane.b32.xlu0 %v484, 126
  %v493 = vpop.permute.xlu0 %492
  %494 = vrot.lane.b32.xlu0 %v489, 126
  %v495 = vpop.permute.xlu0 %494
  %vm496 = vcmp.lt.s32.totalorder %v38, 62
  %v497 = vsel %vm496, 1, 0
  %vm498 = vcmp.eq.s32.totalorder %v497, 1
  %v499 = vsel %vm498, %v493, 0.0
  %v500 = vsel %vm498, %v495, 0.0
  %v501 = vadd.f32 %v406, %v499
  %v502 = vadd.f32 %v407, %v500
  %503 = vadd.xlane.f32.xlu0 %v501
  %v504 = vpop.xlane.xlu0 %503
  %505 = vadd.xlane.f32.xlu0 %v502
  %v506 = vpop.xlane.xlu0 %505
  %v507 = vrcp.pop 128.0
  %v508 = vmul.f32 %v504, %v507
  %v509 = vmul.f32 %v506, %v507
  %v510 = vmul.f32 %v501, %v501
  %v511 = vmul.f32 %v502, %v502
  %512 = vadd.xlane.f32.xlu0 %v510
  %v513 = vpop.xlane.xlu0 %512
  %514 = vadd.xlane.f32.xlu0 %v511
  %v515 = vpop.xlane.xlu0 %514
  %v516 = vmul.f32 %v513, %v507
  %v517 = vmul.f32 %v515, %v507
  %v518 = vmul.f32 %v508, %v508
  %v519 = vmul.f32 %v509, %v509
  %v520 = vsub.f32 %v516, %v518
  %v521 = vsub.f32 %v517, %v519
  %v522 = vsub.f32 %v501, %v508
  %v523 = vsub.f32 %v502, %v509
  %v524 = vadd.f32 %v520, 1e-05
  %v525 = vadd.f32 %v521, 1e-05
  %v526 = vrsqrt.pop %v524
  %v527 = vrsqrt.pop %v525
  %v528 = vmul.f32 %v522, %v526
  %v529 = vmul.f32 %v523, %v527
  %v530 = vld [vmem:[%s3] sm:$0xff]
  %v531 = vld [vmem:[%s3 + $0x8] sm:$0xff]
  %533 = vset.pattern.permute.xlu0 0
  %534 = vperm.xlu0 %533, %v530
  %v535 = vpop.permute.xlu0 %534
  %538 = vset.pattern.permute.xlu0 0
  %539 = vperm.xlu0 %538, %v531
  %v540 = vpop.permute.xlu0 %539
  %v542 = vmul.f32 %v528, %v535
  %v543 = vmul.f32 %v529, %v540
  %v544 = vld [vmem:[%s4] sm:$0xff]
  %v545 = vld [vmem:[%s4 + $0x8] sm:$0xff]
  %547 = vset.pattern.permute.xlu0 0
  %548 = vperm.xlu0 %547, %v544
  %v549 = vpop.permute.xlu0 %548
  %552 = vset.pattern.permute.xlu0 0
  %553 = vperm.xlu0 %552, %v545
  %v554 = vpop.permute.xlu0 %553
  %v556 = vadd.f32 %v542, %v549
  %v557 = vadd.f32 %v543, %v554
  %v558 = vxor.u32 %v556, 2147483648
  %v559 = vxor.u32 %v557, 2147483648
  %v560 = vmul.f32 %v558, 1.442695
  %v561 = vpow.pop %v560
  %v562 = vmul.f32 %v559, 1.442695
  %v563 = vpow.pop %v562
  %v564 = vadd.f32 %v561, 1.0
  %v565 = vadd.f32 %v563, 1.0
  %v566 = vrcp.pop %v564
  %v567 = vmul.f32 1.0, %v566
  %v568 = vrcp.pop %v565
  %v569 = vmul.f32 1.0, %v568
  %v570 = vmul.f32 %v556, %v567
  %v571 = vmul.f32 %v557, %v569
  %v572 = vld [vmem:[%s2] sm:$0xff]
  %v573 = vld [vmem:[%s2 + $0x8] sm:$0xff]
  %v575 = vsel %vm41, %v572, 0
  %v578 = vsel %vm41, %v573, 0
  %580 = vmatprep.subr.mxu0 0.0
  %581 = vmatpush1.msra.mxu0 %v570
  %582 = vmatprep.subr.mxu0 0.0
  %583 = vmatpush1.msra.mxu0 %v571
  %584 = vmatprep.subr.mxu0 0.0
  %585 = vmatpush1.msra.mxu0 0.0
  %586 = vmatprep.subr.mxu0 0.0
  %587 = vmatpush1.msra.mxu0 0.0
  %588 = vmatprep.subr.mxu0 0.0
  %589 = vmatpush1.msra.mxu0 0.0
  %590 = vmatprep.subr.mxu0 0.0
  %591 = vmatpush1.msra.mxu0 0.0
  %592 = vmatprep.subr.mxu0 0.0
  %593 = vmatpush1.msra.mxu0 0.0
  %594 = vmatprep.subr.mxu0 0.0
  %595 = vmatpush1.msra.mxu0 0.0
  %596 = vmatprep.subr.mxu0 0.0
  %597 = vmatpush1.msra.mxu0 0.0
  %598 = vmatprep.subr.mxu0 0.0
  %599 = vmatpush1.msra.mxu0 0.0
  %600 = vmatprep.subr.mxu0 0.0
  %601 = vmatpush1.msra.mxu0 0.0
  %602 = vmatprep.subr.mxu0 0.0
  %603 = vmatpush1.msra.mxu0 0.0
  %604 = vmatprep.subr.mxu0 0.0
  %605 = vmatpush1.msra.mxu0 0.0
  %606 = vmatprep.subr.mxu0 0.0
  %607 = vmatpush1.msra.mxu0 0.0
  %608 = vmatprep.subr.mxu0 0.0
  %609 = vmatpush1.msra.mxu0 0.0
  %610 = vmatprep.subr.mxu0 0.0
  %611 = vmatpush1.msra.mxu0 0.0
  %612 = vmatprep.subr.mxu0 0.0
  %613 = vmatpush1.msra.mxu0 0.0
  %614 = vmatprep.subr.mxu0 0.0
  %615 = vmatpush1.msra.mxu0 0.0
  %616 = vmatprep.subr.mxu0 0.0
  %617 = vmatpush1.msra.mxu0 0.0
  %618 = vmatprep.subr.mxu0 0.0
  %619 = vmatpush1.msra.mxu0 0.0
  %620 = vmatprep.subr.mxu0 0.0
  %621 = vmatpush1.msra.mxu0 0.0
  %622 = vmatprep.subr.mxu0 0.0
  %623 = vmatpush1.msra.mxu0 0.0
  %624 = vmatprep.subr.mxu0 0.0
  %625 = vmatpush1.msra.mxu0 0.0
  %626 = vmatprep.subr.mxu0 0.0
  %627 = vmatpush1.msra.mxu0 0.0
  %628 = vmatprep.subr.mxu0 0.0
  %629 = vmatpush1.msra.mxu0 0.0
  %630 = vmatprep.subr.mxu0 0.0
  %631 = vmatpush1.msra.mxu0 0.0
  %632 = vmatprep.subr.mxu0 0.0
  %633 = vmatpush1.msra.mxu0 0.0
  %634 = vmatprep.subr.mxu0 0.0
  %635 = vmatpush1.msra.mxu0 0.0
  %636 = vmatprep.subr.mxu0 0.0
  %637 = vmatpush1.msra.mxu0 0.0
  %638 = vmatprep.subr.mxu0 0.0
  %639 = vmatpush1.msra.mxu0 0.0
  %640 = vmatprep.subr.mxu0 0.0
  %641 = vmatpush1.msra.mxu0 0.0
  %642 = vmatprep.subr.mxu0 0.0
  %643 = vmatpush1.msra.mxu0 0.0
  %644 = vmatprep.mubr.f32.mxu0 0.0
  %645 = vmatmul.mubr.f32.gmra.mrb[0].mxu0 %v575
  %v646 = vpop.f32.mrb[0].mxu0
  %v647 = vadd.f32 0.0, %v646
  %v648 = vpop.f32.mrb[0].mxu0
  %649 = vmatprep.mubr.f32.mxu0 0.0
  %650 = vmatmul.mubr.f32.gmra.mrb[0].mxu0 %v578
  %v651 = vpop.f32.mrb[0].mxu0
  %v652 = vadd.f32 0.0, %v651
  %v653 = vpop.f32.mrb[0].mxu0
  %654 = vdwg.mxu0
  %655 = vrot.lane.b32.xlu0 %v647, 1
  %v656 = vpop.permute.xlu0 %655
  %657 = vrot.lane.b32.xlu0 %v652, 1
  %v658 = vpop.permute.xlu0 %657
  %v659 = vsel %vm222, %v656, 0.0
  %v660 = vsel %vm222, %v658, 0.0
  %s661 = scalar_lea.vmem %s2, 16
  %v662 = vld [vmem:[%s661] sm:$0xff]
  %v663 = vld [vmem:[%s661 + $0x8] sm:$0xff]
  %v665 = vsel %vm41, %v662, 0
  %v668 = vsel %vm41, %v663, 0
  %670 = vmatprep.subr.mxu0 0.0
  %671 = vmatpush1.msra.mxu0 %v570
  %672 = vmatprep.subr.mxu0 0.0
  %673 = vmatpush1.msra.mxu0 %v571
  %674 = vmatprep.subr.mxu0 0.0
  %675 = vmatpush1.msra.mxu0 0.0
  %676 = vmatprep.subr.mxu0 0.0
  %677 = vmatpush1.msra.mxu0 0.0
  %678 = vmatprep.subr.mxu0 0.0
  %679 = vmatpush1.msra.mxu0 0.0
  %680 = vmatprep.subr.mxu0 0.0
  %681 = vmatpush1.msra.mxu0 0.0
  %682 = vmatprep.subr.mxu0 0.0
  %683 = vmatpush1.msra.mxu0 0.0
  %684 = vmatprep.subr.mxu0 0.0
  %685 = vmatpush1.msra.mxu0 0.0
  %686 = vmatprep.subr.mxu0 0.0
  %687 = vmatpush1.msra.mxu0 0.0
  %688 = vmatprep.subr.mxu0 0.0
  %689 = vmatpush1.msra.mxu0 0.0
  %690 = vmatprep.subr.mxu0 0.0
  %691 = vmatpush1.msra.mxu0 0.0
  %692 = vmatprep.subr.mxu0 0.0
  %693 = vmatpush1.msra.mxu0 0.0
  %694 = vmatprep.subr.mxu0 0.0
  %695 = vmatpush1.msra.mxu0 0.0
  %696 = vmatprep.subr.mxu0 0.0
  %697 = vmatpush1.msra.mxu0 0.0
  %698 = vmatprep.subr.mxu0 0.0
  %699 = vmatpush1.msra.mxu0 0.0
  %700 = vmatprep.subr.mxu0 0.0
  %701 = vmatpush1.msra.mxu0 0.0
  %702 = vmatprep.subr.mxu0 0.0
  %703 = vmatpush1.msra.mxu0 0.0
  %704 = vmatprep.subr.mxu0 0.0
  %705 = vmatpush1.msra.mxu0 0.0
  %706 = vmatprep.subr.mxu0 0.0
  %707 = vmatpush1.msra.mxu0 0.0
  %708 = vmatprep.subr.mxu0 0.0
  %709 = vmatpush1.msra.mxu0 0.0
  %710 = vmatprep.subr.mxu0 0.0
  %711 = vmatpush1.msra.mxu0 0.0
  %712 = vmatprep.subr.mxu0 0.0
  %713 = vmatpush1.msra.mxu0 0.0
  %714 = vmatprep.subr.mxu0 0.0
  %715 = vmatpush1.msra.mxu0 0.0
  %716 = vmatprep.subr.mxu0 0.0
  %717 = vmatpush1.msra.mxu0 0.0
  %718 = vmatprep.subr.mxu0 0.0
  %719 = vmatpush1.msra.mxu0 0.0
  %720 = vmatprep.subr.mxu0 0.0
  %721 = vmatpush1.msra.mxu0 0.0
  %722 = vmatprep.subr.mxu0 0.0
  %723 = vmatpush1.msra.mxu0 0.0
  %724 = vmatprep.subr.mxu0 0.0
  %725 = vmatpush1.msra.mxu0 0.0
  %726 = vmatprep.subr.mxu0 0.0
  %727 = vmatpush1.msra.mxu0 0.0
  %728 = vmatprep.subr.mxu0 0.0
  %729 = vmatpush1.msra.mxu0 0.0
  %730 = vmatprep.subr.mxu0 0.0
  %731 = vmatpush1.msra.mxu0 0.0
  %732 = vmatprep.subr.mxu0 0.0
  %733 = vmatpush1.msra.mxu0 0.0
  %734 = vmatprep.mubr.f32.mxu0 0.0
  %735 = vmatmul.mubr.f32.gmra.mrb[0].mxu0 %v665
  %v736 = vpop.f32.mrb[0].mxu0
  %v737 = vadd.f32 0.0, %v736
  %v738 = vpop.f32.mrb[0].mxu0
  %739 = vmatprep.mubr.f32.mxu0 0.0
  %740 = vmatmul.mubr.f32.gmra.mrb[0].mxu0 %v668
  %v741 = vpop.f32.mrb[0].mxu0
  %v742 = vadd.f32 0.0, %v741
  %v743 = vpop.f32.mrb[0].mxu0
  %744 = vdwg.mxu0
  %v745 = vadd.f32 %v659, %v737
  %v746 = vadd.f32 %v660, %v742
  %s747 = scalar_lea.vmem %s2, 32
  %v748 = vld [vmem:[%s747] sm:$0xff]
  %v749 = vld [vmem:[%s747 + $0x8] sm:$0xff]
  %v751 = vsel %vm41, %v748, 0
  %v754 = vsel %vm41, %v749, 0
  %756 = vmatprep.subr.mxu0 0.0
  %757 = vmatpush1.msra.mxu0 %v570
  %758 = vmatprep.subr.mxu0 0.0
  %759 = vmatpush1.msra.mxu0 %v571
  %760 = vmatprep.subr.mxu0 0.0
  %761 = vmatpush1.msra.mxu0 0.0
  %762 = vmatprep.subr.mxu0 0.0
  %763 = vmatpush1.msra.mxu0 0.0
  %764 = vmatprep.subr.mxu0 0.0
  %765 = vmatpush1.msra.mxu0 0.0
  %766 = vmatprep.subr.mxu0 0.0
  %767 = vmatpush1.msra.mxu0 0.0
  %768 = vmatprep.subr.mxu0 0.0
  %769 = vmatpush1.msra.mxu0 0.0
  %770 = vmatprep.subr.mxu0 0.0
  %771 = vmatpush1.msra.mxu0 0.0
  %772 = vmatprep.subr.mxu0 0.0
  %773 = vmatpush1.msra.mxu0 0.0
  %774 = vmatprep.subr.mxu0 0.0
  %775 = vmatpush1.msra.mxu0 0.0
  %776 = vmatprep.subr.mxu0 0.0
  %777 = vmatpush1.msra.mxu0 0.0
  %778 = vmatprep.subr.mxu0 0.0
  %779 = vmatpush1.msra.mxu0 0.0
  %780 = vmatprep.subr.mxu0 0.0
  %781 = vmatpush1.msra.mxu0 0.0
  %782 = vmatprep.subr.mxu0 0.0
  %783 = vmatpush1.msra.mxu0 0.0
  %784 = vmatprep.subr.mxu0 0.0
  %785 = vmatpush1.msra.mxu0 0.0
  %786 = vmatprep.subr.mxu0 0.0
  %787 = vmatpush1.msra.mxu0 0.0
  %788 = vmatprep.subr.mxu0 0.0
  %789 = vmatpush1.msra.mxu0 0.0
  %790 = vmatprep.subr.mxu0 0.0
  %791 = vmatpush1.msra.mxu0 0.0
  %792 = vmatprep.subr.mxu0 0.0
  %793 = vmatpush1.msra.mxu0 0.0
  %794 = vmatprep.subr.mxu0 0.0
  %795 = vmatpush1.msra.mxu0 0.0
  %796 = vmatprep.subr.mxu0 0.0
  %797 = vmatpush1.msra.mxu0 0.0
  %798 = vmatprep.subr.mxu0 0.0
  %799 = vmatpush1.msra.mxu0 0.0
  %800 = vmatprep.subr.mxu0 0.0
  %801 = vmatpush1.msra.mxu0 0.0
  %802 = vmatprep.subr.mxu0 0.0
  %803 = vmatpush1.msra.mxu0 0.0
  %804 = vmatprep.subr.mxu0 0.0
  %805 = vmatpush1.msra.mxu0 0.0
  %806 = vmatprep.subr.mxu0 0.0
  %807 = vmatpush1.msra.mxu0 0.0
  %808 = vmatprep.subr.mxu0 0.0
  %809 = vmatpush1.msra.mxu0 0.0
  %810 = vmatprep.subr.mxu0 0.0
  %811 = vmatpush1.msra.mxu0 0.0
  %812 = vmatprep.subr.mxu0 0.0
  %813 = vmatpush1.msra.mxu0 0.0
  %814 = vmatprep.subr.mxu0 0.0
  %815 = vmatpush1.msra.mxu0 0.0
  %816 = vmatprep.subr.mxu0 0.0
  %817 = vmatpush1.msra.mxu0 0.0
  %818 = vmatprep.subr.mxu0 0.0
  %819 = vmatpush1.msra.mxu0 0.0
  %820 = vmatprep.mubr.f32.mxu0 0.0
  %821 = vmatmul.mubr.f32.gmra.mrb[0].mxu0 %v751
  %v822 = vpop.f32.mrb[0].mxu0
  %v823 = vadd.f32 0.0, %v822
  %v824 = vpop.f32.mrb[0].mxu0
  %825 = vmatprep.mubr.f32.mxu0 0.0
  %826 = vmatmul.mubr.f32.gmra.mrb[0].mxu0 %v754
  %v827 = vpop.f32.mrb[0].mxu0
  %v828 = vadd.f32 0.0, %v827
  %v829 = vpop.f32.mrb[0].mxu0
  %830 = vdwg.mxu0
  %831 = vrot.lane.b32.xlu0 %v823, 127
  %v832 = vpop.permute.xlu0 %831
  %833 = vrot.lane.b32.xlu0 %v828, 127
  %v834 = vpop.permute.xlu0 %833
  %v835 = vsel %vm403, %v832, 0.0
  %v836 = vsel %vm403, %v834, 0.0
  %v837 = vadd.f32 %v745, %v835
  %v838 = vadd.f32 %v746, %v836
  %v839 = vld [vmem:[%s5] sm:$0xff]
  %v840 = vld [vmem:[%s5 + $0x8] sm:$0xff]
  %842 = vset.pattern.permute.xlu0 0
  %843 = vperm.xlu0 %842, %v839
  %v844 = vpop.permute.xlu0 %843
  %847 = vset.pattern.permute.xlu0 0
  %848 = vperm.xlu0 %847, %v840
  %v849 = vpop.permute.xlu0 %848
  %v851 = vadd.f32 %v837, %v844
  %v852 = vadd.f32 %v838, %v849
  %v853 = vmul.f32 %v851, 0.1
  %v854 = vmul.f32 %v852, 0.1
  %v855 = vadd.f32 %v23, %v853
  %v856 = vadd.f32 %v24, %v854
  %857 = vst [vmem:[%s6] sm:$0xff] %v855
  %858 = vst [vmem:[%s6 + $0x8] sm:$0xff] %v856
  // Predicated region
  $region26: #{residual_block.1} parent=0 // pred_check
    _
  $region27: #{residual_block.1} parent=0 // pred_check_branch
    %860 = sbr.rel (0) target = $region29
  $region28: #{residual_block.1} parent=0 // pred_region
    _
  $region29: #{residual_block.1} parent=0 // pred_fallthru
    _
  // Predicated region
  $region30: #{residual_block.1} parent=0 // pred_check
    _
  $region31: #{residual_block.1} parent=0 // pred_check_branch
    %862 = sbr.rel (0) target = $region33
  $region32: #{residual_block.1} parent=0 // pred_region
    _
  $region33: #{residual_block.1} parent=0 // pred_fallthru
    _

</llo_original>
